<compile_context>
chip_gen: v6e
topology: v6e:2x2x1
jax: 0.10.0
libtpu: 0.0.40
codegen_flags: <defaults>
</compile_context>

<pallas_src>
import jax
import jax.numpy as jnp
from jax.experimental import pallas as pl
from jax.experimental.pallas import tpu as pltpu


def _round_up(x, m):
    return ((x + m - 1) // m) * m


def lowrank_rank1_kernel(x_ref, wl_ref, wr_ref, b_ref, o_ref, s_ref):
    # s = x @ W_left computed once per row tile (j == 0), cached in VMEM.
    @pl.when(pl.program_id(1) == 0)
    def _():
        prod = x_ref[...] * wl_ref[...]               # promotes to widest dtype
        s_ref[...] = jnp.sum(prod, axis=-1, keepdims=True, dtype=jnp.float32)

    # Outer product against the W_right lane tile + bias: (tm,1)*(1,tn)+(1,tn).
    out = s_ref[...] * wr_ref[...].astype(jnp.float32) + b_ref[...].astype(jnp.float32)
    o_ref[...] = out.astype(o_ref.dtype)


def low_rank_linear(x, w_left, w_right, b=None, *, tn_cap=1024, tm_cap=4096):
    """y = x @ (W_left * W_right) + b  for rank-1 LowRankLinear."""
    M, K = x.shape
    Kw, r = w_left.shape
    rw, N = w_right.shape
    assert Kw == K and rw == r
    # The torch broadcast `W_left * W_right` only has the intended
    # outer-product semantics for rank == 1 (same restriction as the module).
    assert r == 1, "LowRankLinear broadcast semantics require rank == 1"

    if b is None:
        b = jnp.zeros((N,), dtype=w_right.dtype)

    out_dtype = jnp.result_type(x.dtype, w_left.dtype, w_right.dtype, b.dtype)
    x_isz = x.dtype.itemsize
    o_isz = jnp.dtype(out_dtype).itemsize

    # ---- lane-dense output: pad small N up to 128 lanes (zeros) -------------
    wl_row = w_left.reshape(1, K)                     # keep native dtypes
    wr_row = w_right.reshape(1, N)
    b_row = b.reshape(1, N)
    N_out = N
    if N < 128:
        N_out = 128
        wr_row = jnp.pad(wr_row, ((0, 0), (0, N_out - N)))
        b_row = jnp.pad(b_row, ((0, 0), (0, N_out - N)))
    # TODO(synk): a fully fold-into-lanes output layout ((M,N)->(M*N/128,128))
    # would avoid the final column slice; padding is the simpler robust option.

    tn = N_out if N_out <= tn_cap else tn_cap         # tn_cap is a 128-multiple

    # ---- row tile from a per-generation VMEM budget --------------------------
    sub = max(8, 32 // x_isz)                         # sublane multiple by dtype
    try:
        vmem_cap = int(getattr(pltpu.get_tpu_info(), "vmem_capacity_bytes", 64 << 20))
    except Exception:
        vmem_cap = 64 << 20                           # conservative fallback
    budget = min(int(vmem_cap * 0.72), 110 << 20)     # ~44 MiB v7x, ~92 MiB v5e/v6e

    # Per-row VMEM bytes: double-buffered x/out tiles, f32 widened product temp
    # for the reduction, f32 outer-product temp before astype, s column.
    per_row = 2 * K * x_isz + 4 * K + 2 * tn * o_isz + 4 * tn + 4
    params = 2 * (K * w_left.dtype.itemsize + tn * (w_right.dtype.itemsize + b.dtype.itemsize))
    tile_budget = max(budget - params - (2 << 20), sub * per_row)
    tm = int((tile_budget // per_row) // sub * sub)
    tm = int(max(sub, min(tm, _round_up(M, sub), tm_cap)))
    # Keep >= 2 row tiles so v7x's two TensorCores both take "parallel" i-steps
    # (costs one extra ~0.35us grid step on single-TC v5e/v6e: negligible).
    if pl.cdiv(M, tm) < 2 and M > sub:
        tm = _round_up(pl.cdiv(M, 2), sub)
    # TODO(synk): add a K grid axis + s accumulator (pl.when init/finalize) if
    # 2*tm*K*itemsize alone cannot fit the VMEM budget for very large K.

    grid = (pl.cdiv(M, tm), pl.cdiv(N_out, tn))

    cost = pl.CostEstimate(
        flops=2 * M * K + 2 * M * N,                  # rank-1 reduce + outer product
        transcendentals=0,
        bytes_accessed=(M * K * x_isz + M * N * o_isz
                        + K * w_left.dtype.itemsize
                        + N * (w_right.dtype.itemsize + b.dtype.itemsize)),
    )

    out = pl.pallas_call(
        lowrank_rank1_kernel,
        out_shape=jax.ShapeDtypeStruct((M, N_out), out_dtype),
        grid_spec=pltpu.PrefetchScalarGridSpec(
            num_scalar_prefetch=0,
            grid=grid,
            in_specs=[
                pl.BlockSpec((tm, K), lambda i, j: (i, 0)),   # x row tile (fetched once per i)
                pl.BlockSpec((1, K), lambda i, j: (0, 0)),    # W_left row (resident)
                pl.BlockSpec((1, tn), lambda i, j: (0, j)),   # W_right lane tile
                pl.BlockSpec((1, tn), lambda i, j: (0, j)),   # bias lane tile
            ],
            out_specs=pl.BlockSpec((tm, tn), lambda i, j: (i, j)),
            scratch_shapes=[pltpu.VMEM((tm, 1), jnp.float32)],  # cached s = x @ W_left
        ),
        compiler_params=pltpu.CompilerParams(
            dimension_semantics=("parallel", "arbitrary"),
            vmem_limit_bytes=int(budget),
        ),
        cost_estimate=cost,
    )(x, wl_row, wr_row, b_row)

    return out if N_out == N else out[:, :N]


def glorot_uniform(key, shape, dtype=jnp.float32):
    fan_in, fan_out = shape[0], shape[1]
    limit = (6.0 / (fan_in + fan_out)) ** 0.5
    return jax.random.uniform(key, shape, dtype, minval=-limit, maxval=limit)


if __name__ == "__main__":
    input_dim, output_dim, rank = 32, 32, 1
    M = 16  # flattened batch / seq rows

    root = jax.random.PRNGKey(0)
    k_x, k_l, k_r = jax.random.split(root, 3)

    x = jax.random.normal(k_x, (M, input_dim), dtype=jnp.float32)
    W_left = glorot_uniform(k_l, (input_dim, rank))
    W_right = glorot_uniform(k_r, (rank, output_dim))
    b = jnp.zeros((output_dim,), dtype=jnp.float32)

    out = low_rank_linear(x, W_left, W_right, b)
    out = jax.block_until_ready(out)

    # Reference check (plain JAX), same semantics as the torch forward.
    ref = x @ (W_left * W_right) + b
    assert out.shape == ref.shape
    assert jnp.allclose(out, ref, atol=1e-5, rtol=1e-5), "mismatch vs reference"

    print("KERNEL_OK")
</pallas_src>

<mosaic_0001>
module attributes {stable_mosaic.version = 11 : i64} {
  func.func @lowrank_rank1_kernel(%arg0: i32, %arg1: i32, %arg2: memref<8x32xf32, #tpu.memory_space<vmem>>, %arg3: memref<1x32xf32, #tpu.memory_space<vmem>>, %arg4: memref<1x128xf32, #tpu.memory_space<vmem>>, %arg5: memref<1x128xf32, #tpu.memory_space<vmem>>, %arg6: memref<8x128xf32, #tpu.memory_space<vmem>>, %arg7: memref<8x1xf32, #tpu.memory_space<vmem>>) attributes {dimension_semantics = [#tpu.dimension_semantics<parallel>, #tpu.dimension_semantics<arbitrary>], iteration_bounds = array<i64: 2, 1>, scalar_prefetch = 0 : i64, scratch_operands = 1 : i64, tpu.core_type = #tpu.core_type<tc>, window_params = [{transform_indices = @transform_0, window_bounds = array<i64: 8, 32>}, {pipeline_mode = #tpu.pipeline_mode<synchronous>, transform_indices = @transform_1, window_bounds = array<i64: 1, 32>}, {transform_indices = @transform_2, window_bounds = array<i64: 1, 128>}, {transform_indices = @transform_3, window_bounds = array<i64: 1, 128>}, {transform_indices = @transform_4, window_bounds = array<i64: 8, 128>}]} {
    %c0_i32 = arith.constant 0 : i32
    %0 = arith.cmpi eq, %arg1, %c0_i32 : i32
    %1 = arith.extui %0 : i1 to i32
    %c0_i32_0 = arith.constant 0 : i32
    %2 = arith.cmpi ne, %1, %c0_i32_0 : i32
    scf.if %2 {
      %c0_8 = arith.constant 0 : index
      %c0_9 = arith.constant 0 : index
      %12 = vector.load %arg2[%c0_8, %c0_9] : memref<8x32xf32, #tpu.memory_space<vmem>>, vector<8x32xf32>
      %c0_10 = arith.constant 0 : index
      %c0_11 = arith.constant 0 : index
      %13 = vector.load %arg3[%c0_10, %c0_11] : memref<1x32xf32, #tpu.memory_space<vmem>>, vector<1x32xf32>
      %14 = vector.broadcast %13 : vector<1x32xf32> to vector<8x32xf32>
      %15 = arith.mulf %12, %14 : vector<8x32xf32>
      %cst = arith.constant dense<0.000000e+00> : vector<8xf32>
      %16 = vector.multi_reduction <add>, %15, %cst [1] : vector<8x32xf32> to vector<8xf32>
      %17 = vector.shape_cast %16 : vector<8xf32> to vector<8x1xf32>
      %c0_12 = arith.constant 0 : index
      %c0_13 = arith.constant 0 : index
      %18 = vector.load %arg7[%c0_12, %c0_13] : memref<8x1xf32, #tpu.memory_space<vmem>>, vector<8x1xf32>
      tpu.vector_store %arg7[%c0_12, %c0_13], %17 {strides = array<i32>} : memref<8x1xf32, #tpu.memory_space<vmem>>, vector<8x1xf32>,
    } else {
    }
    %c0 = arith.constant 0 : index
    %c0_1 = arith.constant 0 : index
    %3 = vector.load %arg7[%c0, %c0_1] : memref<8x1xf32, #tpu.memory_space<vmem>>, vector<8x1xf32>
    %c0_2 = arith.constant 0 : index
    %c0_3 = arith.constant 0 : index
    %4 = vector.load %arg4[%c0_2, %c0_3] : memref<1x128xf32, #tpu.memory_space<vmem>>, vector<1x128xf32>
    %5 = vector.broadcast %3 : vector<8x1xf32> to vector<8x128xf32>
    %6 = vector.broadcast %4 : vector<1x128xf32> to vector<8x128xf32>
    %7 = arith.mulf %5, %6 : vector<8x128xf32>
    %c0_4 = arith.constant 0 : index
    %c0_5 = arith.constant 0 : index
    %8 = vector.load %arg5[%c0_4, %c0_5] : memref<1x128xf32, #tpu.memory_space<vmem>>, vector<1x128xf32>
    %9 = vector.broadcast %8 : vector<1x128xf32> to vector<8x128xf32>
    %10 = arith.addf %7, %9 : vector<8x128xf32>
    %c0_6 = arith.constant 0 : index
    %c0_7 = arith.constant 0 : index
    %11 = vector.load %arg6[%c0_6, %c0_7] : memref<8x128xf32, #tpu.memory_space<vmem>>, vector<8x128xf32>
    tpu.vector_store %arg6[%c0_6, %c0_7], %10 {strides = array<i32>} : memref<8x128xf32, #tpu.memory_space<vmem>>, vector<8x128xf32>,
    return
  }
  func.func @transform_0(%arg0: i32, %arg1: i32) -> (i32, i32) {
    %c0_i32 = arith.constant 0 : i32
    %c0_i32_0 = arith.constant 0 : i32
    return %arg0, %c0_i32 : i32, i32
  }
  func.func @transform_1(%arg0: i32, %arg1: i32) -> (i32, i32) {
    %c0_i32 = arith.constant 0 : i32
    %c0_i32_0 = arith.constant 0 : i32
    %c0_i32_1 = arith.constant 0 : i32
    return %c0_i32, %c0_i32_0 : i32, i32
  }
  func.func @transform_2(%arg0: i32, %arg1: i32) -> (i32, i32) {
    %c0_i32 = arith.constant 0 : i32
    %c0_i32_0 = arith.constant 0 : i32
    return %c0_i32, %arg1 : i32, i32
  }
  func.func @transform_3(%arg0: i32, %arg1: i32) -> (i32, i32) {
    %c0_i32 = arith.constant 0 : i32
    %c0_i32_0 = arith.constant 0 : i32
    return %c0_i32, %arg1 : i32, i32
  }
  func.func @transform_4(%arg0: i32, %arg1: i32) -> (i32, i32) {
    %c0_i32 = arith.constant 0 : i32
    return %arg0, %arg1 : i32, i32
  }
}

</mosaic_0001>

<llo_original>
// kernel: tpu_custom_call.1
$region0: #{tpu_custom_call.1}
  #allocation0 [shape = 'u32[]', space=smem, size = 0x4, offset = 0x4, fixed_abs, tag = 'smem constant byte address 0x4 - core index']
  #allocation1 [shape = 'u32[144,128]{1,0:T(1,128)}', space=vmem, size = 0x12000, scoped, tag = 'internal scratch']
  #allocation2 [shape = 'f32[8,1]{1,0:T(8,128)}', space=vmem, size = 0x1000, scoped, tag = 'scratch operand']
  %s0 = inlined_call_operand.hbm [shape: f32[16,32], index: 0, kind: input, shape index: {}]
  %s1 = inlined_call_operand.vmem [shape: f32[1,32], index: 1, kind: input, shape index: {}]
  %s2 = inlined_call_operand.vmem [shape: f32[1,128], index: 2, kind: input, shape index: {}]
  %s3 = inlined_call_operand.vmem [shape: f32[1,128], index: 3, kind: input, shape index: {}]
  %s4 = inlined_call_operand.hbm [shape: f32[16,128], index: 4, kind: output, shape index: {}]
  %s5 = sld [smem:[#allocation0]]
  $region57: #{tpu_custom_call.1} parent=0
    _
  %s7 = ssub.s32 1, %s5
  %s8 = scalar_select 0, %s7, %s5
  $region1: #{tpu_custom_call.1} parent=0
    #allocation3 [shape = 'u8[8192]{0}', space=vmem, size = 0x2000, scoped, tag = 'input window, operand 0']
    #allocation4 [shape = 's32[2]{0}', space=sflag, size = 0x8, scoped, tag = 'scoped memory for tpu_custom_call.1']
    #allocation5 [shape = 's32[2]{0}', space=sflag, size = 0x8, scoped, tag = 'scoped memory for tpu_custom_call.1']
    #allocation6 [shape = 'u8[8192]{0}', space=vmem, size = 0x2000, scoped, tag = 'output window, operand 0']
    %9 = vsyncpa [#allocation4], 0
    %s10 = scalar_lea.sflag [#allocation4], 1
    %11 = vsyncpa %s10, 0
    %12 = vsyncpa [#allocation5], 0
    %s13 = scalar_lea.sflag [#allocation5], 1
    %14 = vsyncpa %s13, 0
    loop: start=0, step=1, limit=4
    $region2: #{tpu_custom_call.1} parent=1 // loop_pre_header
      _
    $region3: #{tpu_custom_call.1} parent=1 // loop_header
      %s16 = sphi 0, %s20
      %p17 = scmp.ge.s32.totalorder %s16, 4
      %s23 = sphi 0, %s35
      %s24 = sphi 0, %s31
      %s25 = sphi 0, %s23
      %s26 = sphi 0, %s24
      %s27 = sphi 0, %s25
      %s28 = sphi 0, %s26
      %s38 = sphi 0, %s40
      %s41 = sphi 0, %s38
      %s42 = sphi 0, %s41
      %s58 = sphi 0, %s42
      %s62 = sphi 0, %s62
      %s64 = sphi 0, %s62
      %s65 = sphi 0, %s64
      %s79 = sphi 0, %s65
      %s85 = sphi 0, %s87
      %s88 = sphi 0, %s85
      %s89 = sphi 0, %s88
      %s105 = sphi 0, %s89
      %s111 = sphi 0, %s113
      %s114 = sphi 0, %s111
      %s115 = sphi 0, %s114
      %s131 = sphi 0, %s115
      %s139 = sphi 0, %s141
      %s142 = sphi 0, %s139
      %s143 = sphi 0, %s142
      %s159 = sphi 0, %s143
    $region4: #{tpu_custom_call.1} parent=1 // loop_header_branch
      %19 = sbr.rel (%p17) target = $region8
    $region5: #{tpu_custom_call.1} parent=1 // loop_body
      %s21 = ssub.s32 %s16, 1
      %s22 = ssub.s32 %s16, 2
      %s29 = sadd.s32 1, %s24
      %p30 = scmp.ge.s32.totalorder %s29, 1
      %s31 = scalar_select %p30, 0, %s29
      %s32 = sadd.s32 1, %s23
      %s33 = scalar_select %p30, %s32, %s23
      %p34 = scmp.ge.s32.totalorder %s33, 2
      %s35 = scalar_select %p34, 0, %s33
      %s36 = ssub.s32 %s23, %s35
      %p37 = scmp.eq.s32.totalorder %s36, 0
      %s39 = sadd.s32 %s38, 1
      %s40 = scalar_select %p37, %s38, %s39
      %p43 = pneg %p37
      %p44 = scmp.eq.s32.totalorder %s16, 1
      %p45 = por %p43, %p44
      %p46 = scmp.ne.s32.totalorder %s38, %s41
      %p47 = scmp.eq.s32.totalorder %s16, 0
      %p48 = por %p46, %p47
      %p49 = scmp.ne.s32.totalorder %s38, %s41
      %p50 = scmp.eq.s32.totalorder %s21, 1
      %p51 = por %p49, %p50
      %p52 = scmp.ne.s32.totalorder %s41, %s42
      %p53 = scmp.eq.s32.totalorder %s21, 0
      %p54 = por %p52, %p53
      %p55 = scmp.ne.s32.totalorder %s41, %s42
      %p56 = scmp.eq.s32.totalorder %s22, 1
      %p57 = por %p55, %p56
      %p59 = scmp.ne.s32.totalorder %s42, %s58
      %p60 = scmp.eq.s32.totalorder %s22, 0
      %p61 = por %p59, %p60
      %s63 = sadd.s32 %s62, 1
      %p66 = scmp.eq.s32.totalorder %s16, 1
      %p67 = scmp.ne.s32.totalorder %s62, %s64
      %p68 = scmp.eq.s32.totalorder %s16, 0
      %p69 = por %p67, %p68
      %p70 = scmp.ne.s32.totalorder %s62, %s64
      %p71 = scmp.eq.s32.totalorder %s21, 1
      %p72 = por %p70, %p71
      %p73 = scmp.ne.s32.totalorder %s64, %s65
      %p74 = scmp.eq.s32.totalorder %s21, 0
      %p75 = por %p73, %p74
      %p76 = scmp.ne.s32.totalorder %s64, %s65
      %p77 = scmp.eq.s32.totalorder %s22, 1
      %p78 = por %p76, %p77
      %p80 = scmp.ne.s32.totalorder %s65, %s79
      %p81 = scmp.eq.s32.totalorder %s22, 0
      %p82 = por %p80, %p81
      %s83 = ssub.s32 %s24, %s31
      %p84 = scmp.eq.s32.totalorder %s83, 0
      %s86 = sadd.s32 %s85, 1
      %s87 = scalar_select %p84, %s85, %s86
      %p90 = pneg %p84
      %p91 = scmp.eq.s32.totalorder %s16, 1
      %p92 = por %p90, %p91
      %p93 = scmp.ne.s32.totalorder %s85, %s88
      %p94 = scmp.eq.s32.totalorder %s16, 0
      %p95 = por %p93, %p94
      %p96 = scmp.ne.s32.totalorder %s85, %s88
      %p97 = scmp.eq.s32.totalorder %s21, 1
      %p98 = por %p96, %p97
      %p99 = scmp.ne.s32.totalorder %s88, %s89
      %p100 = scmp.eq.s32.totalorder %s21, 0
      %p101 = por %p99, %p100
      %p102 = scmp.ne.s32.totalorder %s88, %s89
      %p103 = scmp.eq.s32.totalorder %s22, 1
      %p104 = por %p102, %p103
      %p106 = scmp.ne.s32.totalorder %s89, %s105
      %p107 = scmp.eq.s32.totalorder %s22, 0
      %p108 = por %p106, %p107
      %s109 = ssub.s32 %s24, %s31
      %p110 = scmp.eq.s32.totalorder %s109, 0
      %s112 = sadd.s32 %s111, 1
      %s113 = scalar_select %p110, %s111, %s112
      %p116 = pneg %p110
      %p117 = scmp.eq.s32.totalorder %s16, 1
      %p118 = por %p116, %p117
      %p119 = scmp.ne.s32.totalorder %s111, %s114
      %p120 = scmp.eq.s32.totalorder %s16, 0
      %p121 = por %p119, %p120
      %p122 = scmp.ne.s32.totalorder %s111, %s114
      %p123 = scmp.eq.s32.totalorder %s21, 1
      %p124 = por %p122, %p123
      %p125 = scmp.ne.s32.totalorder %s114, %s115
      %p126 = scmp.eq.s32.totalorder %s21, 0
      %p127 = por %p125, %p126
      %p128 = scmp.ne.s32.totalorder %s114, %s115
      %p129 = scmp.eq.s32.totalorder %s22, 1
      %p130 = por %p128, %p129
      %p132 = scmp.ne.s32.totalorder %s115, %s131
      %p133 = scmp.eq.s32.totalorder %s22, 0
      %p134 = por %p132, %p133
      %s135 = ssub.s32 %s23, %s35
      %s136 = ssub.s32 %s24, %s31
      %s137 = sor.u32 %s135, %s136
      %p138 = scmp.eq.s32.totalorder %s137, 0
      %s140 = sadd.s32 %s139, 1
      %s141 = scalar_select %p138, %s139, %s140
      %p144 = pneg %p138
      %p145 = scmp.eq.s32.totalorder %s16, 1
      %p146 = por %p144, %p145
      %p147 = scmp.ne.s32.totalorder %s139, %s142
      %p148 = scmp.eq.s32.totalorder %s16, 0
      %p149 = por %p147, %p148
      %p150 = scmp.ne.s32.totalorder %s139, %s142
      %p151 = scmp.eq.s32.totalorder %s21, 1
      %p152 = por %p150, %p151
      %p153 = scmp.ne.s32.totalorder %s142, %s143
      %p154 = scmp.eq.s32.totalorder %s21, 0
      %p155 = por %p153, %p154
      %p156 = scmp.ne.s32.totalorder %s142, %s143
      %p157 = scmp.eq.s32.totalorder %s22, 1
      %p158 = por %p156, %p157
      %p160 = scmp.ne.s32.totalorder %s143, %s159
      %p161 = scmp.eq.s32.totalorder %s22, 0
      %p162 = por %p160, %p161
      %p163 = scmp.le.s32.totalorder 1, %s16
      %p164 = scmp.lt.s32.totalorder %s16, 3
      %p165 = pnand %p163, %p164
      %p166 = pneg %p165
      // Predicated region
      $region9: #{tpu_custom_call.1} parent=5 // pred_check
        _
      $region10: #{tpu_custom_call.1} parent=5 // pred_check_branch
        %168 = sbr.rel (%p165) target = $region12
      $region11: #{tpu_custom_call.1} parent=5 // pred_region
        %s169 = ssub.s32 %s16, 1
        // Predicated region
        $region13: #{tpu_custom_call.1} parent=11 // pred_check
          %p170 = pneg %p75
        $region14: #{tpu_custom_call.1} parent=11 // pred_check_branch
          %172 = sbr.rel (%p170) target = $region16
        $region15: #{tpu_custom_call.1} parent=11 // pred_region
          _
        $region16: #{tpu_custom_call.1} parent=11 // pred_fallthru
          _
        // Predicated region
        $region17: #{tpu_custom_call.1} parent=11 // pred_check
          %p173 = pneg %p101
        $region18: #{tpu_custom_call.1} parent=11 // pred_check_branch
          %175 = sbr.rel (%p173) target = $region20
        $region19: #{tpu_custom_call.1} parent=11 // pred_region
          %p176 = scmp.lt.s32.totalorder %s26, 0
          %s177 = scalar_select %p176, %s26, 0
          %s178 = scalar_lea.vmem %s2, %s177
        $region20: #{tpu_custom_call.1} parent=11 // pred_fallthru
          _
        // Predicated region
        $region21: #{tpu_custom_call.1} parent=11 // pred_check
          %p179 = pneg %p127
        $region22: #{tpu_custom_call.1} parent=11 // pred_check_branch
          %181 = sbr.rel (%p179) target = $region24
        $region23: #{tpu_custom_call.1} parent=11 // pred_region
          %p182 = scmp.lt.s32.totalorder %s26, 0
          %s183 = scalar_select %p182, %s26, 0
          %s184 = scalar_lea.vmem %s3, %s183
        $region24: #{tpu_custom_call.1} parent=11 // pred_fallthru
          _
      $region12: #{tpu_custom_call.1} parent=5 // pred_fallthru
        _
      %p185 = scmp.lt.s32.totalorder %s16, 2
      // Predicated region
      $region25: #{tpu_custom_call.1} parent=5 // pred_check
        %p186 = pneg %p185
      $region26: #{tpu_custom_call.1} parent=5 // pred_check_branch
        %188 = sbr.rel (%p186) target = $region28
      $region27: #{tpu_custom_call.1} parent=5 // pred_region
        // Predicated region
        $region29: #{tpu_custom_call.1} parent=27 // pred_check
          %p189 = pneg %p48
        $region30: #{tpu_custom_call.1} parent=27 // pred_check_branch
          %191 = sbr.rel (%p189) target = $region32
        $region31: #{tpu_custom_call.1} parent=27 // pred_region
          %s192 = sand.u32 %s38, 1
          %s193 = scalar_lea.sflag [#allocation4], %s192
          %s194 = sand.u32 %s38, 1
          %s195 = smul.addr %s194, 8
          %s196 = scalar_lea.vmem [#allocation3], %s195
          %s198 = ssub.s32 128, 128
          %199 = vsyncadd %s193, %s198
          %s200 = smul.addr %s23, 128
          %s201 = scalar_lea.hbm %s0, %s200
          %s203 = sshll.u32 %s196, 4
          %s204 = int_to_ptr.vmem [resolvable:$true] %s203
          %206 = dma.hbm_to_vmem [thread:$0]  %s201, 128, %s204, %s193
        $region32: #{tpu_custom_call.1} parent=27 // pred_fallthru
          _
      $region28: #{tpu_custom_call.1} parent=5 // pred_fallthru
        _
      %p207 = scmp.le.s32.totalorder 1, %s16
      %p208 = scmp.lt.s32.totalorder %s16, 3
      %p209 = pnand %p207, %p208
      %p210 = pneg %p209
      // Predicated region
      $region33: #{tpu_custom_call.1} parent=5 // pred_check
        _
      $region34: #{tpu_custom_call.1} parent=5 // pred_check_branch
        %212 = sbr.rel (%p209) target = $region36
      $region35: #{tpu_custom_call.1} parent=5 // pred_region
        %s213 = ssub.s32 %s16, 1
        %s214 = sand.u32 %s41, 1
        %s215 = scalar_lea.sflag [#allocation4], %s214
        %s216 = sand.u32 %s41, 1
        %s217 = smul.addr %s216, 8
        %s218 = scalar_lea.vmem [#allocation3], %s217
        // Predicated region
        $region37: #{tpu_custom_call.1} parent=35 // pred_check
          %p219 = pneg %p54
        $region38: #{tpu_custom_call.1} parent=35 // pred_check_branch
          %221 = sbr.rel (%p219) target = $region40
        $region39: #{tpu_custom_call.1} parent=35 // pred_region
          %222 = dma.done %s215, 128
        $region40: #{tpu_custom_call.1} parent=35 // pred_fallthru
          _
        %s223 = sand.u32 %s41, 1
        %s224 = scalar_lea.sflag [#allocation4], %s223
        %s225 = sand.u32 %s41, 1
        %s226 = smul.addr %s225, 8
        %s227 = scalar_lea.vmem [#allocation3], %s226
        %p228 = pneg %p54
        %p229 = pneg %p51
        %p230 = pneg %p75
        %p231 = pneg %p72
        %p232 = scmp.lt.s32.totalorder %s26, 0
        %s233 = scalar_select %p232, %s26, 0
        %s234 = scalar_lea.vmem %s2, %s233
        %p235 = pneg %p101
        %p236 = pneg %p98
        %p237 = scmp.lt.s32.totalorder %s26, 0
        %s238 = scalar_select %p237, %s26, 0
        %s239 = scalar_lea.vmem %s3, %s238
        %p240 = pneg %p127
        %p241 = pneg %p124
        %p242 = pneg %p155
        %p243 = pneg %p152
        %s244 = sand.u32 %s142, 1
        %s245 = scalar_lea.sflag [#allocation5], %s244
        %s246 = sand.u32 %s142, 1
        %s247 = smul.addr %s246, 8
        %s248 = scalar_lea.vmem [#allocation6], %s247
        %p249 = scmp.lt.s32.totalorder %s26, 0
        %s250 = scalar_select %p249, %s26, 0
        %s251 = scalar_lea.vmem %s2, %s250
        %p252 = scmp.lt.s32.totalorder %s26, 0
        %s253 = scalar_select %p252, %s26, 0
        %s254 = scalar_lea.vmem %s3, %s253
        %p255 = scmp.eq.s32.totalorder %s26, 0
        // Predicated region
        $region41: #{tpu_custom_call.1} parent=35 // pred_check
          %p256 = pneg %p255
        $region42: #{tpu_custom_call.1} parent=35 // pred_check_branch
          %258 = sbr.rel (%p256) target = $region44
        $region43: #{tpu_custom_call.1} parent=35 // pred_region
          %v259 = vld [vmem:[%s218] sm:$0xff]
          %v260 = vld [vmem:[%s1] sm:$0x1]
          %v262 = vlaneseq
          %v263 = vshrl.u32 %v262, 7
          %v264 = vsub.s32 0, %v263
          %v265 = vrot.slane %v260, %v264
          %v267 = vmul.f32 %v259, %v265
          %vm268 = vcmask 261120
          %v269 = vsel %vm268, %v267, 0.0
          %270 = vadd.xlane.f32.xlu0 %v269
          %v271 = vpop.xlane.xlu0 %270
          %vm272 = vcmask 7168
          %273 = vst.msk [vmem:[#allocation2] sm:$0xff] %vm272, %v271
        $region44: #{tpu_custom_call.1} parent=35 // pred_fallthru
          _
        %v274 = vld [vmem:[#allocation2] sm:$0xff]
        %v275 = vld [vmem:[%s251] sm:$0x1]
        %277 = vset.pattern.permute.xlu0 0
        %278 = vperm.xlu0 %277, %v274
        %v279 = vpop.permute.xlu0 %278
        %v282 = vlaneseq
        %v283 = vshrl.u32 %v282, 7
        %v284 = vsub.s32 0, %v283
        %v285 = vrot.slane %v275, %v284
        %v287 = vmul.f32 %v279, %v285
        %v288 = vld [vmem:[%s254] sm:$0x1]
        %v290 = vlaneseq
        %v291 = vshrl.u32 %v290, 7
        %v292 = vsub.s32 0, %v291
        %v293 = vrot.slane %v288, %v292
        %v295 = vadd.f32 %v287, %v293
        %296 = vst [vmem:[%s248] sm:$0xff] %v295
        %s297 = sand.u32 %s142, 1
        %s298 = scalar_lea.sflag [#allocation5], %s297
        %s299 = sand.u32 %s142, 1
        %s300 = smul.addr %s299, 8
        %s301 = scalar_lea.vmem [#allocation6], %s300
        // Predicated region
        $region45: #{tpu_custom_call.1} parent=35 // pred_check
          %p302 = pneg %p152
        $region46: #{tpu_custom_call.1} parent=35 // pred_check_branch
          %304 = sbr.rel (%p302) target = $region48
        $region47: #{tpu_custom_call.1} parent=35 // pred_region
          %s306 = ssub.s32 128, 128
          %307 = vsyncadd %s298, %s306
          %s308 = sadd.s32 %s26, %s25
          %s309 = smul.addr %s308, 128
          %s310 = scalar_lea.hbm %s4, %s309
          %s312 = sshll.u32 %s301, 4
          %s313 = int_to_ptr.vmem [resolvable:$true] %s312
          %315 = dma.vmem_to_hbm [thread:$0]  %s313, 128, %s310, %s298
        $region48: #{tpu_custom_call.1} parent=35 // pred_fallthru
          _
      $region36: #{tpu_custom_call.1} parent=5 // pred_fallthru
        _
      %p316 = scmp.le.s32.totalorder 2, %s16
      // Predicated region
      $region49: #{tpu_custom_call.1} parent=5 // pred_check
        %p317 = pneg %p316
      $region50: #{tpu_custom_call.1} parent=5 // pred_check_branch
        %319 = sbr.rel (%p317) target = $region52
      $region51: #{tpu_custom_call.1} parent=5 // pred_region
        %s320 = ssub.s32 %s16, 2
        // Predicated region
        $region53: #{tpu_custom_call.1} parent=51 // pred_check
          %p321 = pneg %p158
        $region54: #{tpu_custom_call.1} parent=51 // pred_check_branch
          %323 = sbr.rel (%p321) target = $region56
        $region55: #{tpu_custom_call.1} parent=51 // pred_region
          %s324 = sand.u32 %s143, 1
          %s325 = scalar_lea.sflag [#allocation5], %s324
          %s326 = sand.u32 %s143, 1
          %s327 = smul.addr %s326, 8
          %s328 = scalar_lea.vmem [#allocation6], %s327
          %329 = dma.done %s325, 128
        $region56: #{tpu_custom_call.1} parent=51 // pred_fallthru
          _
      $region52: #{tpu_custom_call.1} parent=5 // pred_fallthru
        _
    $region6: #{tpu_custom_call.1} parent=1 // loop_footer
      %s20 = sadd.s32 1, %s16
    $region7: #{tpu_custom_call.1} parent=1 // loop_footer_branch
      %15 = sbr.rel target = $region3
    $region8: #{tpu_custom_call.1} parent=1 // loop_exit
      _
    %330 = vsyncpa [#allocation4], 1
    %s331 = scalar_lea.sflag [#allocation4], 1
    %332 = vsyncpa %s331, 1
    %333 = vsyncpa [#allocation5], 1
    %s334 = scalar_lea.sflag [#allocation5], 1
    %335 = vsyncpa %s334, 1

</llo_original>
